<compile_context>
chip_gen: v7x
topology: tpu7x:2x2x1
jax: 0.10.0
libtpu: 0.0.40
codegen_flags: <defaults>
</compile_context>

<pallas_src>
import functools

import jax
import jax.numpy as jnp
from jax.experimental import pallas as pl
from jax.experimental.pallas import tpu as pltpu


def _round_up(n, m):
    return (n + m - 1) // m * m


def _ffn_kernel(x_ref, g_ref, b_ref, w1_ref, b1_ref, w2_ref, b2_ref, o_ref,
                *, dim, dim_padded):
    """One (tm, dim_padded) row tile of the feed-forward block.

    x_ref : (TM, dim_p)      activation tile (model dtype)
    g_ref : (1, dim_p)  f32  LayerNorm gamma (zero-padded)
    b_ref : (1, dim_p)  f32  LayerNorm beta  (zero-padded)
    w1_ref: (dim_p, hid_p) bf16
    b1_ref: (1, hid_p)  f32
    w2_ref: (hid_p, dim_p) bf16
    b2_ref: (1, dim_p)  f32
    o_ref : (TM, dim_p)      output tile
    """
    x = x_ref[...].astype(jnp.float32)
    inv_dim = 1.0 / dim

    # --- LayerNorm over the true feature width (padded columns are zero) ---
    mu = jnp.sum(x, axis=-1, keepdims=True) * inv_dim
    d = x - mu
    if dim != dim_padded:
        col = jax.lax.broadcasted_iota(jnp.int32, x.shape, 1)
        d = jnp.where(col < dim, d, 0.0)
    var = jnp.sum(d * d, axis=-1, keepdims=True) * inv_dim
    xn = d * jax.lax.rsqrt(var + 1e-5)
    xn = xn * g_ref[...] + b_ref[...]     # gamma/beta zero-padded -> padded cols stay 0

    # --- Linear(dim -> hidden) on the MXU: bf16 operands, f32 accumulation ---
    h = jnp.dot(xn.astype(jnp.bfloat16), w1_ref[...],
                preferred_element_type=jnp.float32)
    h = h + b1_ref[...]
    # tanh-GELU: transcendental goes to the EUP slot (free next to the MXU).
    h = jax.nn.gelu(h, approximate=True)

    # --- Linear(hidden -> dim) ---
    y = jnp.dot(h.astype(jnp.bfloat16), w2_ref[...],
                preferred_element_type=jnp.float32)
    y = y + b2_ref[...]

    # Dropout(p=0.0) is the identity -> nothing to do.
    o_ref[...] = y.astype(o_ref.dtype)


@functools.partial(jax.jit, static_argnames=("tm",))
def feed_forward(x, gamma, beta, w1, b1, w2, b2, *, tm=256):
    """x: (B, S, dim).  Returns (B, S, dim)."""
    B, S, dim = x.shape
    hidden = w1.shape[1]
    rows = B * S
    assert tm % 8 == 0, "row tile must be a multiple of the sublane count (8)"

    # Pad feature dims to lane width (128) and rows to the row tile.
    dim_p = _round_up(dim, 128)
    hid_p = _round_up(hidden, 128)
    tm_eff = min(tm, _round_up(rows, 8))
    rows_p = _round_up(rows, tm_eff)

    x2d = x.reshape(rows, dim)
    x2d = jnp.pad(x2d, ((0, rows_p - rows), (0, dim_p - dim)))
    g2 = jnp.pad(gamma, (0, dim_p - dim)).astype(jnp.float32).reshape(1, dim_p)
    be2 = jnp.pad(beta, (0, dim_p - dim)).astype(jnp.float32).reshape(1, dim_p)
    w1p = jnp.pad(w1, ((0, dim_p - dim), (0, hid_p - hidden))).astype(jnp.bfloat16)
    w2p = jnp.pad(w2, ((0, hid_p - hidden), (0, dim_p - dim))).astype(jnp.bfloat16)
    b1p = jnp.pad(b1, (0, hid_p - hidden)).astype(jnp.float32).reshape(1, hid_p)
    b2p = jnp.pad(b2, (0, dim_p - dim)).astype(jnp.float32).reshape(1, dim_p)

    grid = (rows_p // tm_eff,)
    kernel = functools.partial(_ffn_kernel, dim=dim, dim_padded=dim_p)

    # Advisory cost hint for XLA's scheduler.
    flops = 2 * rows_p * dim_p * hid_p * 2          # two matmuls
    bytes_accessed = (2 * rows_p * dim_p * x.dtype.itemsize   # x + out
                      + 2 * dim_p * hid_p * 2                 # bf16 W1 + W2
                      + (hid_p + 3 * dim_p) * 4)              # biases / gamma / beta
    cost = pl.CostEstimate(flops=flops,
                           transcendentals=rows_p * hid_p,
                           bytes_accessed=bytes_accessed)

    out2d = pl.pallas_call(
        kernel,
        out_shape=jax.ShapeDtypeStruct((rows_p, dim_p), x.dtype),
        grid_spec=pltpu.PrefetchScalarGridSpec(
            num_scalar_prefetch=0,
            grid=grid,
            in_specs=[
                pl.BlockSpec((tm_eff, dim_p), lambda i: (i, 0)),   # x tile
                pl.BlockSpec((1, dim_p), lambda i: (0, 0)),        # gamma
                pl.BlockSpec((1, dim_p), lambda i: (0, 0)),        # beta
                pl.BlockSpec((dim_p, hid_p), lambda i: (0, 0)),    # W1 (bf16, resident)
                pl.BlockSpec((1, hid_p), lambda i: (0, 0)),        # b1
                pl.BlockSpec((hid_p, dim_p), lambda i: (0, 0)),    # W2 (bf16, resident)
                pl.BlockSpec((1, dim_p), lambda i: (0, 0)),        # b2
            ],
            out_specs=pl.BlockSpec((tm_eff, dim_p), lambda i: (i, 0)),
        ),
        compiler_params=pltpu.CompilerParams(
            dimension_semantics=("parallel",),        # megacore sharding on v7x
            vmem_limit_bytes=48 * 1024 * 1024,        # above v5e/v6e/v7x scoped defaults
        ),
        cost_estimate=cost,
    )(x2d, g2, be2, w1p, b1p, w2p, b2p)

    return out2d[:rows, :dim].reshape(B, S, dim)


def init_params(key, dim, hidden_dim):
    """Deterministic parameter init mirroring PyTorch defaults (weights stored (in, out))."""
    k1, k2, k3, k4 = jax.random.split(key, 4)
    gamma = jnp.ones((dim,), jnp.float32)
    beta = jnp.zeros((dim,), jnp.float32)
    lim1 = 1.0 / (dim ** 0.5)
    w1 = jax.random.uniform(k1, (dim, hidden_dim), jnp.float32, -lim1, lim1)
    b1 = jax.random.uniform(k2, (hidden_dim,), jnp.float32, -lim1, lim1)
    lim2 = 1.0 / (hidden_dim ** 0.5)
    w2 = jax.random.uniform(k3, (hidden_dim, dim), jnp.float32, -lim2, lim2)
    b2 = jax.random.uniform(k4, (dim,), jnp.float32, -lim2, lim2)
    return gamma, beta, w1, b1, w2, b2


def _reference(x, gamma, beta, w1, b1, w2, b2):
    """Pure f32 reference matching the PyTorch module (exact erf-GELU)."""
    mu = jnp.mean(x, axis=-1, keepdims=True)
    var = jnp.mean(jnp.square(x - mu), axis=-1, keepdims=True)
    xn = (x - mu) * jax.lax.rsqrt(var + 1e-5) * gamma + beta
    h = jax.nn.gelu(xn @ w1 + b1, approximate=False)
    return h @ w2 + b2


if __name__ == "__main__":
    dim, hidden_dim = 32, 64
    B, S = 2, 8

    key = jax.random.PRNGKey(0)
    kx, kp = jax.random.split(key)
    x = jax.random.normal(kx, (B, S, dim), jnp.float32)
    gamma, beta, w1, b1, w2, b2 = init_params(kp, dim, hidden_dim)

    out = feed_forward(x, gamma, beta, w1, b1, w2, b2)
    out = jax.block_until_ready(out)

    ref = _reference(x, gamma, beta, w1, b1, w2, b2)
    assert out.shape == (B, S, dim)
    # bf16 matmuls (f32 accumulation) + tanh-GELU -> loosened tolerance vs. f32/erf ref.
    err = jnp.max(jnp.abs(out - ref))
    assert jnp.allclose(out, ref, atol=3e-2, rtol=3e-2), f"mismatch vs reference (max abs err {err})"

    print("KERNEL_OK")
</pallas_src>

<mosaic_0001>
module attributes {stable_mosaic.version = 11 : i64} {
  func.func @_ffn_kernel(%arg0: i32, %arg1: memref<16x128xf32, #tpu.memory_space<vmem>>, %arg2: memref<1x128xf32, #tpu.memory_space<vmem>>, %arg3: memref<1x128xf32, #tpu.memory_space<vmem>>, %arg4: memref<128x128xbf16, #tpu.memory_space<vmem>>, %arg5: memref<1x128xf32, #tpu.memory_space<vmem>>, %arg6: memref<128x128xbf16, #tpu.memory_space<vmem>>, %arg7: memref<1x128xf32, #tpu.memory_space<vmem>>, %arg8: memref<16x128xf32, #tpu.memory_space<vmem>>) attributes {dimension_semantics = [#tpu.dimension_semantics<parallel>], iteration_bounds = array<i64: 1>, scalar_prefetch = 0 : i64, scratch_operands = 0 : i64, tpu.core_type = #tpu.core_type<tc>, window_params = [{transform_indices = @transform_0, window_bounds = array<i64: 16, 128>}, {pipeline_mode = #tpu.pipeline_mode<synchronous>, transform_indices = @transform_1, window_bounds = array<i64: 1, 128>}, {pipeline_mode = #tpu.pipeline_mode<synchronous>, transform_indices = @transform_2, window_bounds = array<i64: 1, 128>}, {pipeline_mode = #tpu.pipeline_mode<synchronous>, transform_indices = @transform_3, window_bounds = array<i64: 128, 128>}, {pipeline_mode = #tpu.pipeline_mode<synchronous>, transform_indices = @transform_4, window_bounds = array<i64: 1, 128>}, {pipeline_mode = #tpu.pipeline_mode<synchronous>, transform_indices = @transform_5, window_bounds = array<i64: 128, 128>}, {pipeline_mode = #tpu.pipeline_mode<synchronous>, transform_indices = @transform_6, window_bounds = array<i64: 1, 128>}, {transform_indices = @transform_7, window_bounds = array<i64: 16, 128>}]} {
    %c0 = arith.constant 0 : index
    %c0_0 = arith.constant 0 : index
    %0 = vector.load %arg1[%c0, %c0_0] : memref<16x128xf32, #tpu.memory_space<vmem>>, vector<16x128xf32>
    %cst = arith.constant dense<0.000000e+00> : vector<16xf32>
    %1 = vector.multi_reduction <add>, %0, %cst [1] : vector<16x128xf32> to vector<16xf32>
    %2 = vector.shape_cast %1 : vector<16xf32> to vector<16x1xf32>
    %cst_1 = arith.constant 3.125000e-02 : f32
    %3 = vector.broadcast %cst_1 : f32 to vector<16x1xf32>
    %4 = arith.mulf %2, %3 : vector<16x1xf32>
    %5 = vector.broadcast %4 : vector<16x1xf32> to vector<16x128xf32>
    %6 = arith.subf %0, %5 : vector<16x128xf32>
    %7 = tpu.iota {dimensions = array<i32: 1>} : vector<16x128xi32>
    %c32_i32 = arith.constant 32 : i32
    %8 = vector.broadcast %c32_i32 : i32 to vector<16x128xi32>
    %9 = arith.cmpi slt, %7, %8 : vector<16x128xi32>
    %cst_2 = arith.constant 0.000000e+00 : f32
    %10 = vector.broadcast %cst_2 : f32 to vector<16x128xf32>
    %11 = arith.select %9, %6, %10 : vector<16x128xi1>, vector<16x128xf32>
    %12 = arith.mulf %11, %11 : vector<16x128xf32>
    %cst_3 = arith.constant dense<0.000000e+00> : vector<16xf32>
    %13 = vector.multi_reduction <add>, %12, %cst_3 [1] : vector<16x128xf32> to vector<16xf32>
    %14 = vector.shape_cast %13 : vector<16xf32> to vector<16x1xf32>
    %cst_4 = arith.constant 3.125000e-02 : f32
    %15 = vector.broadcast %cst_4 : f32 to vector<16x1xf32>
    %16 = arith.mulf %14, %15 : vector<16x1xf32>
    %cst_5 = arith.constant 9.99999974E-6 : f32
    %17 = vector.broadcast %cst_5 : f32 to vector<16x1xf32>
    %18 = arith.addf %16, %17 : vector<16x1xf32>
    %19 = math.rsqrt %18 : vector<16x1xf32>
    %20 = vector.broadcast %19 : vector<16x1xf32> to vector<16x128xf32>
    %21 = arith.mulf %11, %20 : vector<16x128xf32>
    %c0_6 = arith.constant 0 : index
    %c0_7 = arith.constant 0 : index
    %22 = vector.load %arg2[%c0_6, %c0_7] : memref<1x128xf32, #tpu.memory_space<vmem>>, vector<1x128xf32>
    %23 = vector.broadcast %22 : vector<1x128xf32> to vector<16x128xf32>
    %24 = arith.mulf %21, %23 : vector<16x128xf32>
    %c0_8 = arith.constant 0 : index
    %c0_9 = arith.constant 0 : index
    %25 = vector.load %arg3[%c0_8, %c0_9] : memref<1x128xf32, #tpu.memory_space<vmem>>, vector<1x128xf32>
    %26 = vector.broadcast %25 : vector<1x128xf32> to vector<16x128xf32>
    %27 = arith.addf %24, %26 : vector<16x128xf32>
    %28 = arith.truncf %27 : vector<16x128xf32> to vector<16x128xbf16>
    %c0_10 = arith.constant 0 : index
    %c0_11 = arith.constant 0 : index
    %29 = vector.load %arg4[%c0_10, %c0_11] : memref<128x128xbf16, #tpu.memory_space<vmem>>, vector<128x128xbf16>
    %cst_12 = arith.constant dense<0.000000e+00> : vector<16x128xf32>
    %30 = tpu.matmul %28, %29, %cst_12 {dimension_numbers = #tpu.dot_dimension_numbers<[1], [0], [0], [1], [0, 0, 1, 1], [], []>} : vector<16x128xbf16>, vector<128x128xbf16>, vector<16x128xf32> -> vector<16x128xf32>
    %c0_13 = arith.constant 0 : index
    %c0_14 = arith.constant 0 : index
    %31 = vector.load %arg5[%c0_13, %c0_14] : memref<1x128xf32, #tpu.memory_space<vmem>>, vector<1x128xf32>
    %32 = vector.broadcast %31 : vector<1x128xf32> to vector<16x128xf32>
    %33 = arith.addf %30, %32 : vector<16x128xf32>
    %34 = arith.mulf %33, %33 : vector<16x128xf32>
    %35 = arith.mulf %33, %34 : vector<16x128xf32>
    %cst_15 = arith.constant 4.471500e-02 : f32
    %36 = vector.broadcast %cst_15 : f32 to vector<16x128xf32>
    %37 = arith.mulf %36, %35 : vector<16x128xf32>
    %38 = arith.addf %33, %37 : vector<16x128xf32>
    %cst_16 = arith.constant 0.797884583 : f32
    %39 = vector.broadcast %cst_16 : f32 to vector<16x128xf32>
    %40 = arith.mulf %39, %38 : vector<16x128xf32>
    %41 = math.tanh %40 : vector<16x128xf32>
    %cst_17 = arith.constant 1.000000e+00 : f32
    %42 = vector.broadcast %cst_17 : f32 to vector<16x128xf32>
    %43 = arith.addf %42, %41 : vector<16x128xf32>
    %cst_18 = arith.constant 5.000000e-01 : f32
    %44 = vector.broadcast %cst_18 : f32 to vector<16x128xf32>
    %45 = arith.mulf %44, %43 : vector<16x128xf32>
    %46 = arith.mulf %33, %45 : vector<16x128xf32>
    %47 = arith.truncf %46 : vector<16x128xf32> to vector<16x128xbf16>
    %c0_19 = arith.constant 0 : index
    %c0_20 = arith.constant 0 : index
    %48 = vector.load %arg6[%c0_19, %c0_20] : memref<128x128xbf16, #tpu.memory_space<vmem>>, vector<128x128xbf16>
    %cst_21 = arith.constant dense<0.000000e+00> : vector<16x128xf32>
    %49 = tpu.matmul %47, %48, %cst_21 {dimension_numbers = #tpu.dot_dimension_numbers<[1], [0], [0], [1], [0, 0, 1, 1], [], []>} : vector<16x128xbf16>, vector<128x128xbf16>, vector<16x128xf32> -> vector<16x128xf32>
    %c0_22 = arith.constant 0 : index
    %c0_23 = arith.constant 0 : index
    %50 = vector.load %arg7[%c0_22, %c0_23] : memref<1x128xf32, #tpu.memory_space<vmem>>, vector<1x128xf32>
    %51 = vector.broadcast %50 : vector<1x128xf32> to vector<16x128xf32>
    %52 = arith.addf %49, %51 : vector<16x128xf32>
    %c0_24 = arith.constant 0 : index
    %c0_25 = arith.constant 0 : index
    %53 = vector.load %arg8[%c0_24, %c0_25] : memref<16x128xf32, #tpu.memory_space<vmem>>, vector<16x128xf32>
    tpu.vector_store %arg8[%c0_24, %c0_25], %52 {strides = array<i32>} : memref<16x128xf32, #tpu.memory_space<vmem>>, vector<16x128xf32>,
    return
  }
  func.func @transform_0(%arg0: i32) -> (i32, i32) {
    %c0_i32 = arith.constant 0 : i32
    %c0_i32_0 = arith.constant 0 : i32
    return %arg0, %c0_i32 : i32, i32
  }
  func.func @transform_1(%arg0: i32) -> (i32, i32) {
    %c0_i32 = arith.constant 0 : i32
    %c0_i32_0 = arith.constant 0 : i32
    %c0_i32_1 = arith.constant 0 : i32
    return %c0_i32, %c0_i32_0 : i32, i32
  }
  func.func @transform_2(%arg0: i32) -> (i32, i32) {
    %c0_i32 = arith.constant 0 : i32
    %c0_i32_0 = arith.constant 0 : i32
    %c0_i32_1 = arith.constant 0 : i32
    return %c0_i32, %c0_i32_0 : i32, i32
  }
  func.func @transform_3(%arg0: i32) -> (i32, i32) {
    %c0_i32 = arith.constant 0 : i32
    %c0_i32_0 = arith.constant 0 : i32
    %c0_i32_1 = arith.constant 0 : i32
    return %c0_i32, %c0_i32_0 : i32, i32
  }
  func.func @transform_4(%arg0: i32) -> (i32, i32) {
    %c0_i32 = arith.constant 0 : i32
    %c0_i32_0 = arith.constant 0 : i32
    %c0_i32_1 = arith.constant 0 : i32
    return %c0_i32, %c0_i32_0 : i32, i32
  }
  func.func @transform_5(%arg0: i32) -> (i32, i32) {
    %c0_i32 = arith.constant 0 : i32
    %c0_i32_0 = arith.constant 0 : i32
    %c0_i32_1 = arith.constant 0 : i32
    return %c0_i32, %c0_i32_0 : i32, i32
  }
  func.func @transform_6(%arg0: i32) -> (i32, i32) {
    %c0_i32 = arith.constant 0 : i32
    %c0_i32_0 = arith.constant 0 : i32
    %c0_i32_1 = arith.constant 0 : i32
    return %c0_i32, %c0_i32_0 : i32, i32
  }
  func.func @transform_7(%arg0: i32) -> (i32, i32) {
    %c0_i32 = arith.constant 0 : i32
    %c0_i32_0 = arith.constant 0 : i32
    return %arg0, %c0_i32 : i32, i32
  }
}

</mosaic_0001>

<llo_original>
// kernel: feed_forward.1
$region0: #{feed_forward.1}
  #allocation0 [shape = 'u32[]', space=smem, size = 0x4, offset = 0x4, fixed_abs, tag = 'smem constant byte address 0x4 - core index']
  #allocation1 [shape = 'u32[144,128]{1,0:T(1,128)}', space=vmem, size = 0x12000, scoped, tag = 'internal scratch']
  %s0 = inlined_call_operand.vmem [shape: f32[16,128], index: 0, kind: input, shape index: {}]
  %s1 = inlined_call_operand.vmem [shape: f32[1,128], index: 1, kind: input, shape index: {}]
  %s2 = inlined_call_operand.vmem [shape: f32[1,128], index: 2, kind: input, shape index: {}]
  %s3 = inlined_call_operand.vmem [shape: bf16[128,128], index: 3, kind: input, shape index: {}]
  %s4 = inlined_call_operand.vmem [shape: f32[1,128], index: 4, kind: input, shape index: {}]
  %s5 = inlined_call_operand.vmem [shape: bf16[128,128], index: 5, kind: input, shape index: {}]
  %s6 = inlined_call_operand.vmem [shape: f32[1,128], index: 6, kind: input, shape index: {}]
  %s7 = inlined_call_operand.vmem [shape: f32[16,128], index: 7, kind: output, shape index: {}]
  %s8 = sld [smem:[#allocation0]]
  $region38: #{feed_forward.1} parent=0
    _
  %s10 = ssub.s32 1, %s8
  %s11 = scalar_select 0, %s10, %s8
  // Predicated region
  $region2: #{feed_forward.1} parent=0 // pred_check
    _
  $region3: #{feed_forward.1} parent=0 // pred_check_branch
    %13 = sbr.rel (0) target = $region5
  $region4: #{feed_forward.1} parent=0 // pred_region
    _
  $region5: #{feed_forward.1} parent=0 // pred_fallthru
    _
  // Predicated region
  $region6: #{feed_forward.1} parent=0 // pred_check
    _
  $region7: #{feed_forward.1} parent=0 // pred_check_branch
    %15 = sbr.rel (0) target = $region9
  $region8: #{feed_forward.1} parent=0 // pred_region
    _
  $region9: #{feed_forward.1} parent=0 // pred_fallthru
    _
  // Predicated region
  $region10: #{feed_forward.1} parent=0 // pred_check
    _
  $region11: #{feed_forward.1} parent=0 // pred_check_branch
    %17 = sbr.rel (0) target = $region13
  $region12: #{feed_forward.1} parent=0 // pred_region
    _
  $region13: #{feed_forward.1} parent=0 // pred_fallthru
    _
  // Predicated region
  $region14: #{feed_forward.1} parent=0 // pred_check
    _
  $region15: #{feed_forward.1} parent=0 // pred_check_branch
    %19 = sbr.rel (0) target = $region17
  $region16: #{feed_forward.1} parent=0 // pred_region
    _
  $region17: #{feed_forward.1} parent=0 // pred_fallthru
    _
  // Predicated region
  $region18: #{feed_forward.1} parent=0 // pred_check
    _
  $region19: #{feed_forward.1} parent=0 // pred_check_branch
    %21 = sbr.rel (0) target = $region21
  $region20: #{feed_forward.1} parent=0 // pred_region
    _
  $region21: #{feed_forward.1} parent=0 // pred_fallthru
    _
  // Predicated region
  $region22: #{feed_forward.1} parent=0 // pred_check
    _
  $region23: #{feed_forward.1} parent=0 // pred_check_branch
    %23 = sbr.rel (0) target = $region25
  $region24: #{feed_forward.1} parent=0 // pred_region
    _
  $region25: #{feed_forward.1} parent=0 // pred_fallthru
    _
  // Predicated region
  $region26: #{feed_forward.1} parent=0 // pred_check
    _
  $region27: #{feed_forward.1} parent=0 // pred_check_branch
    %25 = sbr.rel (0) target = $region29
  $region28: #{feed_forward.1} parent=0 // pred_region
    _
  $region29: #{feed_forward.1} parent=0 // pred_fallthru
    _
  %v27 = vld [vmem:[%s0] sm:$0xff]
  %v28 = vld [vmem:[%s0 + $0x8] sm:$0xff]
  %29 = vadd.xlane.f32.xlu0 %v27
  %v30 = vpop.xlane.xlu0 %29
  %31 = vadd.xlane.f32.xlu0 %v28
  %v32 = vpop.xlane.xlu0 %31
  %v33 = vmul.f32 %v30, 0.03125
  %v34 = vmul.f32 %v32, 0.03125
  %v35 = vsub.f32 %v27, %v33
  %v36 = vsub.f32 %v28, %v34
  %v37 = vlaneseq
  %v38 = vand.u32 %v37, 127
  %vm39 = vcmp.lt.s32.totalorder %v38, 32
  %v40 = vsel %vm39, %v35, 0.0
  %v41 = vsel %vm39, %v36, 0.0
  %v42 = vmul.f32 %v40, %v40
  %v43 = vmul.f32 %v41, %v41
  %44 = vadd.xlane.f32.xlu0 %v42
  %v45 = vpop.xlane.xlu0 %44
  %46 = vadd.xlane.f32.xlu0 %v43
  %v47 = vpop.xlane.xlu0 %46
  %v48 = vmul.f32 %v45, 0.03125
  %v49 = vmul.f32 %v47, 0.03125
  %v50 = vadd.f32 %v48, 1e-05
  %v51 = vadd.f32 %v49, 1e-05
  %v52 = vrsqrt.pop %v50
  %v53 = vrsqrt.pop %v51
  %v54 = vmul.f32 %v40, %v52
  %v55 = vmul.f32 %v41, %v53
  %v56 = vld [vmem:[%s1] sm:$0x1]
  %v58 = vlaneseq
  %v59 = vshrl.u32 %v58, 7
  %v60 = vsub.s32 0, %v59
  %v61 = vrot.slane %v56, %v60
  %v63 = vmul.f32 %v54, %v61
  %v64 = vmul.f32 %v55, %v61
  %v65 = vld [vmem:[%s2] sm:$0x1]
  %v67 = vlaneseq
  %v68 = vshrl.u32 %v67, 7
  %v69 = vsub.s32 0, %v68
  %v70 = vrot.slane %v65, %v69
  %v72 = vadd.f32 %v63, %v70
  %v73 = vadd.f32 %v64, %v70
  %v74 = vpack.c.bf16 %v73, %v72
  %v75 = vld [vmem:[%s3] sm:$0xf]
  %v76 = vld [vmem:[%s3 + $0x4] sm:$0xf]
  %v77 = vld [vmem:[%s3 + $0x8] sm:$0xf]
  %v78 = vld [vmem:[%s3 + $0xc] sm:$0xf]
  %v79 = vld [vmem:[%s3 + $0x10] sm:$0xf]
  %v80 = vld [vmem:[%s3 + $0x14] sm:$0xf]
  %v81 = vld [vmem:[%s3 + $0x18] sm:$0xf]
  %v82 = vld [vmem:[%s3 + $0x1c] sm:$0xf]
  %v83 = vld [vmem:[%s3 + $0x20] sm:$0xf]
  %v84 = vld [vmem:[%s3 + $0x24] sm:$0xf]
  %v85 = vld [vmem:[%s3 + $0x28] sm:$0xf]
  %v86 = vld [vmem:[%s3 + $0x2c] sm:$0xf]
  %v87 = vld [vmem:[%s3 + $0x30] sm:$0xf]
  %v88 = vld [vmem:[%s3 + $0x34] sm:$0xf]
  %v89 = vld [vmem:[%s3 + $0x38] sm:$0xf]
  %v90 = vld [vmem:[%s3 + $0x3c] sm:$0xf]
  %v91 = vld [vmem:[%s4] sm:$0x1]
  %v93 = vlaneseq
  %v94 = vshrl.u32 %v93, 7
  %v95 = vsub.s32 0, %v94
  %v96 = vrot.slane %v91, %v95
  %v114 = vunpack.c.l.b16 %v75
  %v115 = vunpack.c.l.b16 %v76
  %v116 = vunpack.c.l.b16 %v77
  %v117 = vunpack.c.l.b16 %v78
  %v118 = vunpack.c.l.b16 %v79
  %v119 = vunpack.c.l.b16 %v80
  %v120 = vunpack.c.l.b16 %v81
  %v121 = vunpack.c.l.b16 %v82
  %v122 = vunpack.c.l.b16 %v83
  %v123 = vunpack.c.l.b16 %v84
  %v124 = vunpack.c.l.b16 %v85
  %v125 = vunpack.c.l.b16 %v86
  %v126 = vunpack.c.l.b16 %v87
  %v127 = vunpack.c.l.b16 %v88
  %v128 = vunpack.c.l.b16 %v89
  %v129 = vunpack.c.l.b16 %v90
  %v130 = vpack.c.b16 %v115, %v114
  %v131 = vpack.c.b16 %v117, %v116
  %v132 = vpack.c.b16 %v119, %v118
  %v133 = vpack.c.b16 %v121, %v120
  %v134 = vpack.c.b16 %v123, %v122
  %v135 = vpack.c.b16 %v125, %v124
  %v136 = vpack.c.b16 %v127, %v126
  %v137 = vpack.c.b16 %v129, %v128
  %146 = vmatprep.subr.bf16.mxu0 0
  %147 = vmatpush1.bf16.msra.mxu0 %v130
  %148 = vmatprep.subr.bf16.mxu0 0
  %149 = vmatpush1.bf16.msra.mxu0 %v131
  %150 = vmatprep.subr.bf16.mxu0 0
  %151 = vmatpush1.bf16.msra.mxu0 %v132
  %152 = vmatprep.subr.bf16.mxu0 0
  %153 = vmatpush1.bf16.msra.mxu0 %v133
  %154 = vmatprep.subr.bf16.mxu0 0
  %155 = vmatpush1.bf16.msra.mxu0 %v134
  %156 = vmatprep.subr.bf16.mxu0 0
  %157 = vmatpush1.bf16.msra.mxu0 %v135
  %158 = vmatprep.subr.bf16.mxu0 0
  %159 = vmatpush1.bf16.msra.mxu0 %v136
  %160 = vmatprep.subr.bf16.mxu0 0
  %161 = vmatpush1.bf16.msra.mxu0 %v137
  %162 = vmatprep.subr.bf16.mxu0 0
  %163 = vmatpush1.bf16.msra.mxu0 0
  %164 = vmatprep.subr.bf16.mxu0 0
  %165 = vmatpush1.bf16.msra.mxu0 0
  %166 = vmatprep.subr.bf16.mxu0 0
  %167 = vmatpush1.bf16.msra.mxu0 0
  %168 = vmatprep.subr.bf16.mxu0 0
  %169 = vmatpush1.bf16.msra.mxu0 0
  %170 = vmatprep.subr.bf16.mxu0 0
  %171 = vmatpush1.bf16.msra.mxu0 0
  %172 = vmatprep.subr.bf16.mxu0 0
  %173 = vmatpush1.bf16.msra.mxu0 0
  %174 = vmatprep.subr.bf16.mxu0 0
  %175 = vmatpush1.bf16.msra.mxu0 0
  %176 = vmatprep.subr.bf16.mxu0 0
  %177 = vmatpush1.bf16.msra.mxu0 0
  %178 = vmatprep.mubr.bf16.mxu0 0
  %179 = vmatmul.mubr.bf16.gmra.mrb[0].mxu0 %v74
  %v180 = vpop.f32.mrb[0].mxu0
  %v181 = vadd.f32 %v96, %v180
  %v182 = vpop.f32.mrb[0].mxu0
  %v183 = vpop.f32.mrb[0].mxu0
  %v184 = vadd.f32 %v96, %v183
  %v185 = vpop.f32.mrb[0].mxu0
  %186 = vdwg.mxu0
  %v187 = vmul.f32 %v181, %v181
  %v188 = vmul.f32 %v184, %v184
  %v189 = vmul.f32 %v181, %v187
  %v190 = vmul.f32 %v184, %v188
  %v191 = vmul.f32 %v189, 0.044715
  %v192 = vmul.f32 %v190, 0.044715
  %v193 = vadd.f32 %v181, %v191
  %v194 = vadd.f32 %v184, %v192
  %v195 = vmul.f32 %v193, 0.7978846
  %v196 = vmul.f32 %v194, 0.7978846
  %v197 = vtanh.pop %v195
  %v198 = vtanh.pop %v196
  %v199 = vadd.f32 %v197, 1.0
  %v200 = vadd.f32 %v198, 1.0
  %v201 = vmul.f32 %v199, 0.5
  %v202 = vmul.f32 %v200, 0.5
  %v203 = vmul.f32 %v181, %v201
  %v204 = vmul.f32 %v184, %v202
  %v205 = vpack.c.bf16 %v204, %v203
  %v206 = vld [vmem:[%s5] sm:$0xf]
  %v207 = vld [vmem:[%s5 + $0x4] sm:$0xf]
  %v208 = vld [vmem:[%s5 + $0x8] sm:$0xf]
  %v209 = vld [vmem:[%s5 + $0xc] sm:$0xf]
  %v210 = vld [vmem:[%s5 + $0x10] sm:$0xf]
  %v211 = vld [vmem:[%s5 + $0x14] sm:$0xf]
  %v212 = vld [vmem:[%s5 + $0x18] sm:$0xf]
  %v213 = vld [vmem:[%s5 + $0x1c] sm:$0xf]
  %v214 = vld [vmem:[%s5 + $0x20] sm:$0xf]
  %v215 = vld [vmem:[%s5 + $0x24] sm:$0xf]
  %v216 = vld [vmem:[%s5 + $0x28] sm:$0xf]
  %v217 = vld [vmem:[%s5 + $0x2c] sm:$0xf]
  %v218 = vld [vmem:[%s5 + $0x30] sm:$0xf]
  %v219 = vld [vmem:[%s5 + $0x34] sm:$0xf]
  %v220 = vld [vmem:[%s5 + $0x38] sm:$0xf]
  %v221 = vld [vmem:[%s5 + $0x3c] sm:$0xf]
  %v222 = vld [vmem:[%s6] sm:$0x1]
  %v224 = vlaneseq
  %v225 = vshrl.u32 %v224, 7
  %v226 = vsub.s32 0, %v225
  %v227 = vrot.slane %v222, %v226
  %v245 = vunpack.c.l.b16 %v206
  %v246 = vunpack.c.l.b16 %v207
  %v247 = vunpack.c.l.b16 %v208
  %v248 = vunpack.c.l.b16 %v209
  %v249 = vunpack.c.l.b16 %v210
  %v250 = vunpack.c.l.b16 %v211
  %v251 = vunpack.c.l.b16 %v212
  %v252 = vunpack.c.l.b16 %v213
  %v253 = vunpack.c.l.b16 %v214
  %v254 = vunpack.c.l.b16 %v215
  %v255 = vunpack.c.l.b16 %v216
  %v256 = vunpack.c.l.b16 %v217
  %v257 = vunpack.c.l.b16 %v218
  %v258 = vunpack.c.l.b16 %v219
  %v259 = vunpack.c.l.b16 %v220
  %v260 = vunpack.c.l.b16 %v221
  %v261 = vpack.c.b16 %v246, %v245
  %v262 = vpack.c.b16 %v248, %v247
  %v263 = vpack.c.b16 %v250, %v249
  %v264 = vpack.c.b16 %v252, %v251
  %v265 = vpack.c.b16 %v254, %v253
  %v266 = vpack.c.b16 %v256, %v255
  %v267 = vpack.c.b16 %v258, %v257
  %v268 = vpack.c.b16 %v260, %v259
  %277 = vmatprep.subr.bf16.mxu0 0
  %278 = vmatpush1.bf16.msra.mxu0 %v261
  %279 = vmatprep.subr.bf16.mxu0 0
  %280 = vmatpush1.bf16.msra.mxu0 %v262
  %281 = vmatprep.subr.bf16.mxu0 0
  %282 = vmatpush1.bf16.msra.mxu0 %v263
  %283 = vmatprep.subr.bf16.mxu0 0
  %284 = vmatpush1.bf16.msra.mxu0 %v264
  %285 = vmatprep.subr.bf16.mxu0 0
  %286 = vmatpush1.bf16.msra.mxu0 %v265
  %287 = vmatprep.subr.bf16.mxu0 0
  %288 = vmatpush1.bf16.msra.mxu0 %v266
  %289 = vmatprep.subr.bf16.mxu0 0
  %290 = vmatpush1.bf16.msra.mxu0 %v267
  %291 = vmatprep.subr.bf16.mxu0 0
  %292 = vmatpush1.bf16.msra.mxu0 %v268
  %293 = vmatprep.subr.bf16.mxu0 0
  %294 = vmatpush1.bf16.msra.mxu0 0
  %295 = vmatprep.subr.bf16.mxu0 0
  %296 = vmatpush1.bf16.msra.mxu0 0
  %297 = vmatprep.subr.bf16.mxu0 0
  %298 = vmatpush1.bf16.msra.mxu0 0
  %299 = vmatprep.subr.bf16.mxu0 0
  %300 = vmatpush1.bf16.msra.mxu0 0
  %301 = vmatprep.subr.bf16.mxu0 0
  %302 = vmatpush1.bf16.msra.mxu0 0
  %303 = vmatprep.subr.bf16.mxu0 0
  %304 = vmatpush1.bf16.msra.mxu0 0
  %305 = vmatprep.subr.bf16.mxu0 0
  %306 = vmatpush1.bf16.msra.mxu0 0
  %307 = vmatprep.subr.bf16.mxu0 0
  %308 = vmatpush1.bf16.msra.mxu0 0
  %309 = vmatprep.mubr.bf16.mxu0 0
  %310 = vmatmul.mubr.bf16.gmra.mrb[0].mxu0 %v205
  %v311 = vpop.f32.mrb[0].mxu0
  %v312 = vadd.f32 %v227, %v311
  %v313 = vpop.f32.mrb[0].mxu0
  %v314 = vpop.f32.mrb[0].mxu0
  %v315 = vadd.f32 %v227, %v314
  %v316 = vpop.f32.mrb[0].mxu0
  %317 = vdwg.mxu0
  %318 = vst [vmem:[%s7] sm:$0xff] %v312
  %319 = vst [vmem:[%s7 + $0x8] sm:$0xff] %v315
  // Predicated region
  $region30: #{feed_forward.1} parent=0 // pred_check
    _
  $region31: #{feed_forward.1} parent=0 // pred_check_branch
    %321 = sbr.rel (0) target = $region33
  $region32: #{feed_forward.1} parent=0 // pred_region
    _
  $region33: #{feed_forward.1} parent=0 // pred_fallthru
    _
  // Predicated region
  $region34: #{feed_forward.1} parent=0 // pred_check
    _
  $region35: #{feed_forward.1} parent=0 // pred_check_branch
    %323 = sbr.rel (0) target = $region37
  $region36: #{feed_forward.1} parent=0 // pred_region
    _
  $region37: #{feed_forward.1} parent=0 // pred_fallthru
    _

</llo_original>
